<compile_context>
chip_gen: v6e
topology: v6e:2x2x1
jax: 0.10.0
libtpu: 0.0.40
codegen_flags: <defaults>
</compile_context>

<pallas_src>
import functools
import math

import jax
import jax.numpy as jnp
from jax.experimental import pallas as pl
from jax.experimental.pallas import tpu as pltpu

ACTION_DIMENSION = 3
HIDDEN1 = 128
HIDDEN2 = 64           # logical hidden-2 width (PyTorch spec)
HIDDEN2_PAD = 128      # lane-padded hidden-2 width
OUT_PAD = 128          # lane-padded fc3 / output width
MAX_BATCH_TILE = 1024  # rows per grid step


def _actor_kernel(x_ref, w1_ref, b1_ref, w2_ref, b2_ref, w3_ref, b3_ref, o_ref):
    x = x_ref[...]
    h1 = jnp.maximum(
        jnp.dot(x, w1_ref[...], preferred_element_type=jnp.float32) + b1_ref[...], 0.0)
    h2 = jnp.maximum(
        jnp.dot(h1, w2_ref[...], preferred_element_type=jnp.float32) + b2_ref[...], 0.0)
    out = jnp.tanh(
        jnp.dot(h2, w3_ref[...], preferred_element_type=jnp.float32) + b3_ref[...])
    o_ref[...] = out.astype(o_ref.dtype)


def _resident(shape):
    # Weights/biases: full-array block, same block index every grid step -> VMEM resident.
    return pl.BlockSpec(shape, lambda i: (0,) * len(shape))


def _pick_batch_tile(B):
    """Small batches: one tile. Large batches: >=2 tiles (v7x megacore), <=MAX_BATCH_TILE."""
    if B <= 256:
        return B
    half = (-(-B // 2) + 7) // 8 * 8   # cdiv(B,2) rounded up to a sublane multiple
    return min(MAX_BATCH_TILE, half)


@functools.partial(jax.jit, static_argnames=("training",))
def actor_forward(params, state, key=None, training=True, noise_scale=0.1):
    """params: dict w1,b1,w2,b2,w3,b3 (lane-padded, see init_actor_params).
    state: (B, state_dim) f32.  Returns (B, ACTION_DIMENSION) f32.

    Note: like torch.randn_like, fresh exploration noise per call requires the caller
    to pass a fresh `key` each step; reusing a key reproduces the same noise."""
    w1, b1 = params["w1"], params["b1"]
    w2, b2 = params["w2"], params["b2"]
    w3, b3 = params["w3"], params["b3"]

    B, state_dim = state.shape
    tb = _pick_batch_tile(B)
    grid = (pl.cdiv(B, tb),)

    x_spec = pl.BlockSpec((tb, state_dim), lambda i: (i, 0))
    weight_specs = [_resident(w1.shape), _resident(b1.shape),
                    _resident(w2.shape), _resident(b2.shape),
                    _resident(w3.shape), _resident(b3.shape)]
    out_spec = pl.BlockSpec((tb, OUT_PAD), lambda i: (i, 0))

    padded = pl.pallas_call(
        _actor_kernel,
        out_shape=jax.ShapeDtypeStruct((B, OUT_PAD), jnp.float32),
        grid=grid,
        in_specs=[x_spec] + weight_specs,
        out_specs=out_spec,
        compiler_params=pltpu.CompilerParams(dimension_semantics=("parallel",)),
    )(state, w1, b1, w2, b2, w3, b3)

    # Layout plumbing only: drop the lane padding back to the 3 real action dims.
    # (Ragged last tile: rows >= B are never written back, so garbage there is moot.)
    out = padded[:, :ACTION_DIMENSION]

    if training:
        if key is None:
            key = jax.random.PRNGKey(0)
        noise = jax.random.normal(key, out.shape, out.dtype)
        out = jnp.clip(out + noise * noise_scale, -1.0, 1.0)
    return out


def init_actor_params(key, state_dim):
    """nn.Linear default init U(-1/sqrt(fan_in), 1/sqrt(fan_in)).

    Weights stored as (in_dim, out_dim) (transposed vs PyTorch) so the kernel computes
    x @ W + b; biases as (1, out_dim). The hidden-2 width is zero-padded 64 -> 128 and
    the fc3 output width 3 -> 128 so every vreg / MXU pass is lane-dense. Padding is
    numerically exact: ReLU(0)=0 and the padded w3 rows/columns are zero, so the padded
    output columns are tanh(0)=0 and get sliced away by the wrapper.
    """
    params = {}

    # fc1: state_dim -> 128
    key, kw, kb = jax.random.split(key, 3)
    bound = 1.0 / math.sqrt(state_dim)
    params["w1"] = jax.random.uniform(kw, (state_dim, HIDDEN1), jnp.float32, -bound, bound)
    params["b1"] = jax.random.uniform(kb, (1, HIDDEN1), jnp.float32, -bound, bound)

    # fc2: 128 -> 64, output columns zero-padded to 128
    key, kw, kb = jax.random.split(key, 3)
    bound = 1.0 / math.sqrt(HIDDEN1)
    w2 = jax.random.uniform(kw, (HIDDEN1, HIDDEN2), jnp.float32, -bound, bound)
    b2 = jax.random.uniform(kb, (1, HIDDEN2), jnp.float32, -bound, bound)
    params["w2"] = jnp.pad(w2, ((0, 0), (0, HIDDEN2_PAD - HIDDEN2)))
    params["b2"] = jnp.pad(b2, ((0, 0), (0, HIDDEN2_PAD - HIDDEN2)))

    # fc3: 64 -> 3, input rows zero-padded to 128 and output columns to 128
    key, kw, kb = jax.random.split(key, 3)
    bound = 1.0 / math.sqrt(HIDDEN2)
    w3 = jax.random.uniform(kw, (HIDDEN2, ACTION_DIMENSION), jnp.float32, -bound, bound)
    b3 = jax.random.uniform(kb, (1, ACTION_DIMENSION), jnp.float32, -bound, bound)
    params["w3"] = jnp.pad(w3, ((0, HIDDEN2_PAD - HIDDEN2), (0, OUT_PAD - ACTION_DIMENSION)))
    params["b3"] = jnp.pad(b3, ((0, 0), (0, OUT_PAD - ACTION_DIMENSION)))
    return params


# TODO(synk): the PyTorch module's .to(device)/.cpu() host transfer has no Pallas
# equivalent; outputs stay on the default JAX device.

if __name__ == "__main__":
    root = jax.random.PRNGKey(0)
    k_params, k_state, k_big, k_rag, k_noise = jax.random.split(root, 5)
    state_dim = 16
    batch = 2

    params = init_actor_params(k_params, state_dim)
    state = jax.random.normal(k_state, (batch, state_dim), jnp.float32)

    # Pure-JAX reference (padded columns give tanh(0)=0 and are sliced away).
    def ref(params, x):
        h = jnp.maximum(x @ params["w1"] + params["b1"], 0.0)
        h = jnp.maximum(h @ params["w2"] + params["b2"], 0.0)
        return jnp.tanh(h @ params["w3"] + params["b3"])[:, :ACTION_DIMENSION]

    expected = ref(params, state)

    # Eval path: deterministic, must match the reference exactly.
    out_eval = jax.block_until_ready(actor_forward(params, state, training=False))
    assert out_eval.shape == (batch, ACTION_DIMENSION)
    assert jnp.allclose(out_eval, expected, atol=1e-5, rtol=1e-5)

    # Training path with noise_scale = 0: noise term vanishes -> must match reference.
    out_zero = jax.block_until_ready(
        actor_forward(params, state, key=k_noise, training=True, noise_scale=0.0))
    assert jnp.allclose(out_zero, expected, atol=1e-5, rtol=1e-5)

    # Training path with noise: bounded in [-1, 1], finite, correct shape.
    out_train = jax.block_until_ready(
        actor_forward(params, state, key=k_noise, training=True, noise_scale=0.1))
    assert out_train.shape == (batch, ACTION_DIMENSION)
    assert bool(jnp.all(jnp.isfinite(out_train)))
    assert bool(jnp.all(out_train <= 1.0)) and bool(jnp.all(out_train >= -1.0))

    # Multi-tile batch grid: 2048 rows -> 2 tiles of 1024 (one per TC on v7x).
    big_batch = 2048
    state_big = jax.random.normal(k_big, (big_batch, state_dim), jnp.float32)
    out_big = jax.block_until_ready(actor_forward(params, state_big, training=False))
    assert out_big.shape == (big_batch, ACTION_DIMENSION)
    assert jnp.allclose(out_big, ref(params, state_big), atol=1e-5, rtol=1e-5)

    # Ragged last tile (B not a multiple of the tile size).
    rag_batch = 300
    state_rag = jax.random.normal(k_rag, (rag_batch, state_dim), jnp.float32)
    out_rag = jax.block_until_ready(actor_forward(params, state_rag, training=False))
    assert out_rag.shape == (rag_batch, ACTION_DIMENSION)
    assert jnp.allclose(out_rag, ref(params, state_rag), atol=1e-5, rtol=1e-5)

    print("KERNEL_OK")
</pallas_src>

<mosaic_0001>
module attributes {stable_mosaic.version = 11 : i64} {
  func.func @_actor_kernel(%arg0: i32, %arg1: memref<2x16xf32, #tpu.memory_space<vmem>>, %arg2: memref<16x128xf32, #tpu.memory_space<vmem>>, %arg3: memref<1x128xf32, #tpu.memory_space<vmem>>, %arg4: memref<128x128xf32, #tpu.memory_space<vmem>>, %arg5: memref<1x128xf32, #tpu.memory_space<vmem>>, %arg6: memref<128x128xf32, #tpu.memory_space<vmem>>, %arg7: memref<1x128xf32, #tpu.memory_space<vmem>>, %arg8: memref<2x128xf32, #tpu.memory_space<vmem>>) attributes {dimension_semantics = [#tpu.dimension_semantics<parallel>], iteration_bounds = array<i64: 1>, scalar_prefetch = 0 : i64, scratch_operands = 0 : i64, tpu.core_type = #tpu.core_type<tc>, window_params = [{transform_indices = @transform_0, window_bounds = array<i64: 2, 16>}, {pipeline_mode = #tpu.pipeline_mode<synchronous>, transform_indices = @transform_1, window_bounds = array<i64: 16, 128>}, {pipeline_mode = #tpu.pipeline_mode<synchronous>, transform_indices = @transform_2, window_bounds = array<i64: 1, 128>}, {pipeline_mode = #tpu.pipeline_mode<synchronous>, transform_indices = @transform_3, window_bounds = array<i64: 128, 128>}, {pipeline_mode = #tpu.pipeline_mode<synchronous>, transform_indices = @transform_4, window_bounds = array<i64: 1, 128>}, {pipeline_mode = #tpu.pipeline_mode<synchronous>, transform_indices = @transform_5, window_bounds = array<i64: 128, 128>}, {pipeline_mode = #tpu.pipeline_mode<synchronous>, transform_indices = @transform_6, window_bounds = array<i64: 1, 128>}, {transform_indices = @transform_7, window_bounds = array<i64: 2, 128>}]} {
    %c0 = arith.constant 0 : index
    %c0_0 = arith.constant 0 : index
    %0 = vector.load %arg1[%c0, %c0_0] : memref<2x16xf32, #tpu.memory_space<vmem>>, vector<2x16xf32>
    %c0_1 = arith.constant 0 : index
    %c0_2 = arith.constant 0 : index
    %1 = vector.load %arg2[%c0_1, %c0_2] : memref<16x128xf32, #tpu.memory_space<vmem>>, vector<16x128xf32>
    %cst = arith.constant dense<0.000000e+00> : vector<2x128xf32>
    %2 = tpu.matmul %0, %1, %cst {dimension_numbers = #tpu.dot_dimension_numbers<[1], [0], [0], [1], [0, 0, 1, 1], [], []>} : vector<2x16xf32>, vector<16x128xf32>, vector<2x128xf32> -> vector<2x128xf32>
    %c0_3 = arith.constant 0 : index
    %c0_4 = arith.constant 0 : index
    %3 = vector.load %arg3[%c0_3, %c0_4] : memref<1x128xf32, #tpu.memory_space<vmem>>, vector<1x128xf32>
    %4 = vector.broadcast %3 : vector<1x128xf32> to vector<2x128xf32>
    %5 = arith.addf %2, %4 : vector<2x128xf32>
    %cst_5 = arith.constant 0.000000e+00 : f32
    %6 = vector.broadcast %cst_5 : f32 to vector<2x128xf32>
    %7 = arith.maximumf %5, %6 : vector<2x128xf32>
    %c0_6 = arith.constant 0 : index
    %c0_7 = arith.constant 0 : index
    %8 = vector.load %arg4[%c0_6, %c0_7] : memref<128x128xf32, #tpu.memory_space<vmem>>, vector<128x128xf32>
    %cst_8 = arith.constant dense<0.000000e+00> : vector<2x128xf32>
    %9 = tpu.matmul %7, %8, %cst_8 {dimension_numbers = #tpu.dot_dimension_numbers<[1], [0], [0], [1], [0, 0, 1, 1], [], []>} : vector<2x128xf32>, vector<128x128xf32>, vector<2x128xf32> -> vector<2x128xf32>
    %c0_9 = arith.constant 0 : index
    %c0_10 = arith.constant 0 : index
    %10 = vector.load %arg5[%c0_9, %c0_10] : memref<1x128xf32, #tpu.memory_space<vmem>>, vector<1x128xf32>
    %11 = vector.broadcast %10 : vector<1x128xf32> to vector<2x128xf32>
    %12 = arith.addf %9, %11 : vector<2x128xf32>
    %cst_11 = arith.constant 0.000000e+00 : f32
    %13 = vector.broadcast %cst_11 : f32 to vector<2x128xf32>
    %14 = arith.maximumf %12, %13 : vector<2x128xf32>
    %c0_12 = arith.constant 0 : index
    %c0_13 = arith.constant 0 : index
    %15 = vector.load %arg6[%c0_12, %c0_13] : memref<128x128xf32, #tpu.memory_space<vmem>>, vector<128x128xf32>
    %cst_14 = arith.constant dense<0.000000e+00> : vector<2x128xf32>
    %16 = tpu.matmul %14, %15, %cst_14 {dimension_numbers = #tpu.dot_dimension_numbers<[1], [0], [0], [1], [0, 0, 1, 1], [], []>} : vector<2x128xf32>, vector<128x128xf32>, vector<2x128xf32> -> vector<2x128xf32>
    %c0_15 = arith.constant 0 : index
    %c0_16 = arith.constant 0 : index
    %17 = vector.load %arg7[%c0_15, %c0_16] : memref<1x128xf32, #tpu.memory_space<vmem>>, vector<1x128xf32>
    %18 = vector.broadcast %17 : vector<1x128xf32> to vector<2x128xf32>
    %19 = arith.addf %16, %18 : vector<2x128xf32>
    %20 = math.tanh %19 : vector<2x128xf32>
    %c0_17 = arith.constant 0 : index
    %c0_18 = arith.constant 0 : index
    %21 = vector.load %arg8[%c0_17, %c0_18] : memref<2x128xf32, #tpu.memory_space<vmem>>, vector<2x128xf32>
    tpu.vector_store %arg8[%c0_17, %c0_18], %20 {strides = array<i32>} : memref<2x128xf32, #tpu.memory_space<vmem>>, vector<2x128xf32>,
    return
  }
  func.func @transform_0(%arg0: i32) -> (i32, i32) {
    %c0_i32 = arith.constant 0 : i32
    %c0_i32_0 = arith.constant 0 : i32
    return %arg0, %c0_i32 : i32, i32
  }
  func.func @transform_1(%arg0: i32) -> (i32, i32) {
    %c0_i32 = arith.constant 0 : i32
    %c0_i32_0 = arith.constant 0 : i32
    %c0_i32_1 = arith.constant 0 : i32
    return %c0_i32, %c0_i32_0 : i32, i32
  }
  func.func @transform_2(%arg0: i32) -> (i32, i32) {
    %c0_i32 = arith.constant 0 : i32
    %c0_i32_0 = arith.constant 0 : i32
    %c0_i32_1 = arith.constant 0 : i32
    return %c0_i32, %c0_i32_0 : i32, i32
  }
  func.func @transform_3(%arg0: i32) -> (i32, i32) {
    %c0_i32 = arith.constant 0 : i32
    %c0_i32_0 = arith.constant 0 : i32
    %c0_i32_1 = arith.constant 0 : i32
    return %c0_i32, %c0_i32_0 : i32, i32
  }
  func.func @transform_4(%arg0: i32) -> (i32, i32) {
    %c0_i32 = arith.constant 0 : i32
    %c0_i32_0 = arith.constant 0 : i32
    %c0_i32_1 = arith.constant 0 : i32
    return %c0_i32, %c0_i32_0 : i32, i32
  }
  func.func @transform_5(%arg0: i32) -> (i32, i32) {
    %c0_i32 = arith.constant 0 : i32
    %c0_i32_0 = arith.constant 0 : i32
    %c0_i32_1 = arith.constant 0 : i32
    return %c0_i32, %c0_i32_0 : i32, i32
  }
  func.func @transform_6(%arg0: i32) -> (i32, i32) {
    %c0_i32 = arith.constant 0 : i32
    %c0_i32_0 = arith.constant 0 : i32
    %c0_i32_1 = arith.constant 0 : i32
    return %c0_i32, %c0_i32_0 : i32, i32
  }
  func.func @transform_7(%arg0: i32) -> (i32, i32) {
    %c0_i32 = arith.constant 0 : i32
    %c0_i32_0 = arith.constant 0 : i32
    return %arg0, %c0_i32 : i32, i32
  }
}

</mosaic_0001>

<llo_original>
// kernel: actor_forward.1
$region0: #{actor_forward.1}
  #allocation0 [shape = 'u32[]', space=smem, size = 0x4, offset = 0x4, fixed_abs, tag = 'smem constant byte address 0x4 - core index']
  #allocation1 [shape = 'u32[144,128]{1,0:T(1,128)}', space=vmem, size = 0x12000, scoped, tag = 'internal scratch']
  %s0 = inlined_call_operand.vmem [shape: f32[2,16], index: 0, kind: input, shape index: {}]
  %s1 = inlined_call_operand.hbm [shape: f32[16,128], index: 1, kind: input, shape index: {}]
  %s2 = inlined_call_operand.hbm [shape: f32[1,128], index: 2, kind: input, shape index: {}]
  %s3 = inlined_call_operand.hbm [shape: f32[128,128], index: 3, kind: input, shape index: {}]
  %s4 = inlined_call_operand.vmem [shape: f32[1,128], index: 4, kind: input, shape index: {}]
  %s5 = inlined_call_operand.hbm [shape: f32[128,128], index: 5, kind: input, shape index: {}]
  %s6 = inlined_call_operand.hbm [shape: f32[1,128], index: 6, kind: input, shape index: {}]
  %s7 = inlined_call_operand.hbm [shape: f32[2,128], index: 7, kind: output, shape index: {}]
  %s8 = sld [smem:[#allocation0]]
  $region58: #{actor_forward.1} parent=0
    _
  %s10 = ssub.s32 1, %s8
  %s11 = scalar_select 0, %s10, %s8
  $region1: #{actor_forward.1} parent=0
    #allocation2 [shape = 'u8[8192]{0}', space=vmem, size = 0x2000, scoped, tag = 'input window, operand 1, single buffered']
    #allocation3 [shape = 's32[1]{0}', space=sflag, size = 0x4, scoped, tag = 'scoped memory for actor_forward.1']
    #allocation4 [shape = 's32[1]{0}', space=sflag, size = 0x4, scoped, tag = 'scoped memory for actor_forward.1']
    #allocation5 [shape = 'u8[512]{0}', space=vmem, size = 0x400, scoped, tag = 'input window, operand 2, single buffered']
    #allocation6 [shape = 's32[1]{0}', space=sflag, size = 0x4, scoped, tag = 'scoped memory for actor_forward.1']
    #allocation7 [shape = 'u8[65536]{0}', space=vmem, size = 0x10000, scoped, tag = 'input window, operand 3, single buffered']
    #allocation8 [shape = 'u8[65536]{0}', space=vmem, size = 0x10000, scoped, tag = 'input window, operand 5, single buffered']
    #allocation9 [shape = 's32[1]{0}', space=sflag, size = 0x4, scoped, tag = 'scoped memory for actor_forward.1']
    #allocation10 [shape = 'u8[512]{0}', space=vmem, size = 0x400, scoped, tag = 'input window, operand 6, single buffered']
    #allocation11 [shape = 'u8[1024]{0}', space=vmem, size = 0x400, scoped, tag = 'output window, operand 0, single buffered']
    %12 = vsyncpa [#allocation3], 0
    %13 = vsyncpa [#allocation6], 0
    %14 = vsyncpa [#allocation9], 0
    %15 = vsyncpa [#allocation4], 0
    // Predicated region
    $region2: #{actor_forward.1} parent=1 // pred_check
      _
    $region3: #{actor_forward.1} parent=1 // pred_check_branch
      %17 = sbr.rel (0) target = $region5
    $region4: #{actor_forward.1} parent=1 // pred_region
      _
    $region5: #{actor_forward.1} parent=1 // pred_fallthru
      _
    // Predicated region
    $region6: #{actor_forward.1} parent=1 // pred_check
      _
    $region7: #{actor_forward.1} parent=1 // pred_check_branch
      %19 = sbr.rel (0) target = $region9
    $region8: #{actor_forward.1} parent=1 // pred_region
      %s21 = ssub.s32 256, 256
      %22 = vsyncadd [#allocation3], %s21
      %s23 = sshll.u32 [#allocation2], 4
      %s24 = int_to_ptr.vmem [resolvable:$true] %s23
      %29 = dma.hbm_to_vmem [thread:$0]  %s1, 256, %s24, [#allocation3], 128, 128, 8
    $region9: #{actor_forward.1} parent=1 // pred_fallthru
      _
    // Predicated region
    $region10: #{actor_forward.1} parent=1 // pred_check
      _
    $region11: #{actor_forward.1} parent=1 // pred_check_branch
      %31 = sbr.rel (0) target = $region13
    $region12: #{actor_forward.1} parent=1 // pred_region
      %s33 = ssub.s32 16, 16
      %34 = vsyncadd [#allocation6], %s33
      %s36 = sshll.u32 [#allocation5], 4
      %s37 = int_to_ptr.vmem [resolvable:$true] %s36
      %39 = dma.hbm_to_vmem [thread:$0]  %s2, 16, %s37, [#allocation6]
    $region13: #{actor_forward.1} parent=1 // pred_fallthru
      _
    // Predicated region
    $region14: #{actor_forward.1} parent=1 // pred_check
      _
    $region15: #{actor_forward.1} parent=1 // pred_check_branch
      %41 = sbr.rel (0) target = $region17
    $region16: #{actor_forward.1} parent=1 // pred_region
      %s43 = ssub.s32 2048, 2048
      %44 = vsyncadd [#allocation6], %s43
      %s45 = sshll.u32 [#allocation7], 4
      %s46 = int_to_ptr.vmem [resolvable:$true] %s45
      %51 = dma.hbm_to_vmem [thread:$0]  %s3, 2048, %s46, [#allocation6], 128, 128, 8
    $region17: #{actor_forward.1} parent=1 // pred_fallthru
      _
    // Predicated region
    $region18: #{actor_forward.1} parent=1 // pred_check
      _
    $region19: #{actor_forward.1} parent=1 // pred_check_branch
      %53 = sbr.rel (0) target = $region21
    $region20: #{actor_forward.1} parent=1 // pred_region
      _
    $region21: #{actor_forward.1} parent=1 // pred_fallthru
      _
    // Predicated region
    $region22: #{actor_forward.1} parent=1 // pred_check
      _
    $region23: #{actor_forward.1} parent=1 // pred_check_branch
      %55 = sbr.rel (0) target = $region25
    $region24: #{actor_forward.1} parent=1 // pred_region
      %s57 = ssub.s32 2048, 2048
      %58 = vsyncadd [#allocation9], %s57
      %s59 = sshll.u32 [#allocation8], 4
      %s60 = int_to_ptr.vmem [resolvable:$true] %s59
      %65 = dma.hbm_to_vmem [thread:$0]  %s5, 2048, %s60, [#allocation9], 128, 128, 8
    $region25: #{actor_forward.1} parent=1 // pred_fallthru
      _
    // Predicated region
    $region26: #{actor_forward.1} parent=1 // pred_check
      _
    $region27: #{actor_forward.1} parent=1 // pred_check_branch
      %67 = sbr.rel (0) target = $region29
    $region28: #{actor_forward.1} parent=1 // pred_region
      %s69 = ssub.s32 16, 16
      %70 = vsyncadd [#allocation9], %s69
      %s72 = sshll.u32 [#allocation10], 4
      %s73 = int_to_ptr.vmem [resolvable:$true] %s72
      %75 = dma.hbm_to_vmem [thread:$0]  %s6, 16, %s73, [#allocation9]
    $region29: #{actor_forward.1} parent=1 // pred_fallthru
      _
    // Predicated region
    $region30: #{actor_forward.1} parent=1 // pred_check
      _
    $region31: #{actor_forward.1} parent=1 // pred_check_branch
      %77 = sbr.rel (0) target = $region33
    $region32: #{actor_forward.1} parent=1 // pred_region
      %78 = dma.done [#allocation3], 256
    $region33: #{actor_forward.1} parent=1 // pred_fallthru
      _
    // Predicated region
    $region34: #{actor_forward.1} parent=1 // pred_check
      _
    $region35: #{actor_forward.1} parent=1 // pred_check_branch
      %80 = sbr.rel (0) target = $region37
    $region36: #{actor_forward.1} parent=1 // pred_region
      %81 = dma.done [#allocation6], 16
    $region37: #{actor_forward.1} parent=1 // pred_fallthru
      _
    // Predicated region
    $region38: #{actor_forward.1} parent=1 // pred_check
      _
    $region39: #{actor_forward.1} parent=1 // pred_check_branch
      %83 = sbr.rel (0) target = $region41
    $region40: #{actor_forward.1} parent=1 // pred_region
      %84 = dma.done [#allocation6], 2048
    $region41: #{actor_forward.1} parent=1 // pred_fallthru
      _
    // Predicated region
    $region42: #{actor_forward.1} parent=1 // pred_check
      _
    $region43: #{actor_forward.1} parent=1 // pred_check_branch
      %86 = sbr.rel (0) target = $region45
    $region44: #{actor_forward.1} parent=1 // pred_region
      %87 = dma.done [#allocation9], 2048
    $region45: #{actor_forward.1} parent=1 // pred_fallthru
      _
    // Predicated region
    $region46: #{actor_forward.1} parent=1 // pred_check
      _
    $region47: #{actor_forward.1} parent=1 // pred_check_branch
      %89 = sbr.rel (0) target = $region49
    $region48: #{actor_forward.1} parent=1 // pred_region
      %90 = dma.done [#allocation9], 16
    $region49: #{actor_forward.1} parent=1 // pred_fallthru
      _
    %v91 = vld [vmem:[%s0] sm:$0x3]
    %v92 = vld [vmem:[#allocation2] sm:$0xff]
    %v93 = vld [vmem:[#allocation2 + $0x8] sm:$0xff]
    %v94 = vld [vmem:[#allocation5] sm:$0x1]
    %v96 = vlaneseq
    %v97 = vshrl.u32 %v96, 7
    %v98 = vsub.s32 0, %v97
    %v99 = vrot.slane %v94, %v98
    %vm101 = vcmask 130048
    %v103 = vsel %vm101, %v91, 0
    %105 = vmatprep.subr.mxu0 0.0
    %106 = vmatpush1.msra.mxu0 0.0
    %107 = vmatprep.subr.mxu0 0.0
    %108 = vmatpush1.msra.mxu0 0.0
    %109 = vmatprep.subr.mxu0 0.0
    %110 = vmatpush1.msra.mxu0 0.0
    %111 = vmatprep.subr.mxu0 0.0
    %112 = vmatpush1.msra.mxu0 0.0
    %113 = vmatprep.subr.mxu0 0.0
    %114 = vmatpush1.msra.mxu0 0.0
    %115 = vmatprep.subr.mxu0 0.0
    %116 = vmatpush1.msra.mxu0 0.0
    %117 = vmatprep.subr.mxu0 0.0
    %118 = vmatpush1.msra.mxu0 0.0
    %119 = vmatprep.subr.mxu0 0.0
    %120 = vmatpush1.msra.mxu0 0.0
    %121 = vmatprep.subr.mxu0 0.0
    %122 = vmatpush1.msra.mxu0 0.0
    %123 = vmatprep.subr.mxu0 0.0
    %124 = vmatpush1.msra.mxu0 0.0
    %125 = vmatprep.subr.mxu0 0.0
    %126 = vmatpush1.msra.mxu0 0.0
    %127 = vmatprep.subr.mxu0 0.0
    %128 = vmatpush1.msra.mxu0 0.0
    %129 = vmatprep.subr.mxu0 0.0
    %130 = vmatpush1.msra.mxu0 0.0
    %131 = vmatprep.subr.mxu0 0.0
    %132 = vmatpush1.msra.mxu0 0.0
    %133 = vmatprep.subr.mxu0 0.0
    %134 = vmatpush1.msra.mxu0 %v93
    %135 = vmatprep.subr.mxu0 0.0
    %136 = vmatpush1.msra.mxu0 %v92
    %137 = vmatprep.subr.mxu0 0.0
    %138 = vmatpush2.msra.mxu0 0.0
    %139 = vmatprep.subr.mxu0 0.0
    %140 = vmatpush2.msra.mxu0 0.0
    %141 = vmatprep.subr.mxu0 0.0
    %142 = vmatpush2.msra.mxu0 0.0
    %143 = vmatprep.subr.mxu0 0.0
    %144 = vmatpush2.msra.mxu0 0.0
    %145 = vmatprep.subr.mxu0 0.0
    %146 = vmatpush2.msra.mxu0 0.0
    %147 = vmatprep.subr.mxu0 0.0
    %148 = vmatpush2.msra.mxu0 0.0
    %149 = vmatprep.subr.mxu0 0.0
    %150 = vmatpush2.msra.mxu0 0.0
    %151 = vmatprep.subr.mxu0 0.0
    %152 = vmatpush2.msra.mxu0 0.0
    %153 = vmatprep.subr.mxu0 0.0
    %154 = vmatpush2.msra.mxu0 0.0
    %155 = vmatprep.subr.mxu0 0.0
    %156 = vmatpush2.msra.mxu0 0.0
    %157 = vmatprep.subr.mxu0 0.0
    %158 = vmatpush2.msra.mxu0 0.0
    %159 = vmatprep.subr.mxu0 0.0
    %160 = vmatpush2.msra.mxu0 0.0
    %161 = vmatprep.subr.mxu0 0.0
    %162 = vmatpush2.msra.mxu0 0.0
    %163 = vmatprep.subr.mxu0 0.0
    %164 = vmatpush2.msra.mxu0 0.0
    %165 = vmatprep.subr.mxu0 0.0
    %166 = vmatpush2.msra.mxu0 0.0
    %167 = vmatprep.subr.mxu0 0.0
    %168 = vmatpush2.msra.mxu0 0.0
    %169 = vmatprep.mubr.f32.mxu0 0.0
    %170 = vmatmul.mubr.f32.gmra.mxu0 %v103
    %v171 = vpop.f32.mrf.mxu0
    %v172 = vadd.f32 %v99, %v171
    %v173 = vpop.f32.mrf.mxu0
    %174 = vdwg.mxu0
    %v175 = vmax.f32 %v172, 0.0
    %v176 = vld [vmem:[#allocation7] sm:$0xff]
    %v177 = vld [vmem:[#allocation7 + $0x8] sm:$0xff]
    %v178 = vld [vmem:[#allocation7 + $0x10] sm:$0xff]
    %v179 = vld [vmem:[#allocation7 + $0x18] sm:$0xff]
    %v180 = vld [vmem:[#allocation7 + $0x20] sm:$0xff]
    %v181 = vld [vmem:[#allocation7 + $0x28] sm:$0xff]
    %v182 = vld [vmem:[#allocation7 + $0x30] sm:$0xff]
    %v183 = vld [vmem:[#allocation7 + $0x38] sm:$0xff]
    %v184 = vld [vmem:[#allocation7 + $0x40] sm:$0xff]
    %v185 = vld [vmem:[#allocation7 + $0x48] sm:$0xff]
    %v186 = vld [vmem:[#allocation7 + $0x50] sm:$0xff]
    %v187 = vld [vmem:[#allocation7 + $0x58] sm:$0xff]
    %v188 = vld [vmem:[#allocation7 + $0x60] sm:$0xff]
    %v189 = vld [vmem:[#allocation7 + $0x68] sm:$0xff]
    %v190 = vld [vmem:[#allocation7 + $0x70] sm:$0xff]
    %v191 = vld [vmem:[#allocation7 + $0x78] sm:$0xff]
    %v192 = vld [vmem:[%s4] sm:$0x1]
    %v194 = vlaneseq
    %v195 = vshrl.u32 %v194, 7
    %v196 = vsub.s32 0, %v195
    %v197 = vrot.slane %v192, %v196
    %199 = vmatprep.subr.mxu0 0.0
    %200 = vmatpush1.msra.mxu0 %v191
    %201 = vmatprep.subr.mxu0 0.0
    %202 = vmatpush1.msra.mxu0 %v190
    %203 = vmatprep.subr.mxu0 0.0
    %204 = vmatpush1.msra.mxu0 %v189
    %205 = vmatprep.subr.mxu0 0.0
    %206 = vmatpush1.msra.mxu0 %v188
    %207 = vmatprep.subr.mxu0 0.0
    %208 = vmatpush1.msra.mxu0 %v187
    %209 = vmatprep.subr.mxu0 0.0
    %210 = vmatpush1.msra.mxu0 %v186
    %211 = vmatprep.subr.mxu0 0.0
    %212 = vmatpush1.msra.mxu0 %v185
    %213 = vmatprep.subr.mxu0 0.0
    %214 = vmatpush1.msra.mxu0 %v184
    %215 = vmatprep.subr.mxu0 0.0
    %216 = vmatpush1.msra.mxu0 %v183
    %217 = vmatprep.subr.mxu0 0.0
    %218 = vmatpush1.msra.mxu0 %v182
    %219 = vmatprep.subr.mxu0 0.0
    %220 = vmatpush1.msra.mxu0 %v181
    %221 = vmatprep.subr.mxu0 0.0
    %222 = vmatpush1.msra.mxu0 %v180
    %223 = vmatprep.subr.mxu0 0.0
    %224 = vmatpush1.msra.mxu0 %v179
    %225 = vmatprep.subr.mxu0 0.0
    %226 = vmatpush1.msra.mxu0 %v178
    %227 = vmatprep.subr.mxu0 0.0
    %228 = vmatpush1.msra.mxu0 %v177
    %229 = vmatprep.subr.mxu0 0.0
    %230 = vmatpush1.msra.mxu0 %v176
    %231 = vmatprep.subr.mxu0 0.0
    %232 = vmatpush2.msra.mxu0 0.0
    %233 = vmatprep.subr.mxu0 0.0
    %234 = vmatpush2.msra.mxu0 0.0
    %235 = vmatprep.subr.mxu0 0.0
    %236 = vmatpush2.msra.mxu0 0.0
    %237 = vmatprep.subr.mxu0 0.0
    %238 = vmatpush2.msra.mxu0 0.0
    %239 = vmatprep.subr.mxu0 0.0
    %240 = vmatpush2.msra.mxu0 0.0
    %241 = vmatprep.subr.mxu0 0.0
    %242 = vmatpush2.msra.mxu0 0.0
    %243 = vmatprep.subr.mxu0 0.0
    %244 = vmatpush2.msra.mxu0 0.0
    %245 = vmatprep.subr.mxu0 0.0
    %246 = vmatpush2.msra.mxu0 0.0
    %247 = vmatprep.subr.mxu0 0.0
    %248 = vmatpush2.msra.mxu0 0.0
    %249 = vmatprep.subr.mxu0 0.0
    %250 = vmatpush2.msra.mxu0 0.0
    %251 = vmatprep.subr.mxu0 0.0
    %252 = vmatpush2.msra.mxu0 0.0
    %253 = vmatprep.subr.mxu0 0.0
    %254 = vmatpush2.msra.mxu0 0.0
    %255 = vmatprep.subr.mxu0 0.0
    %256 = vmatpush2.msra.mxu0 0.0
    %257 = vmatprep.subr.mxu0 0.0
    %258 = vmatpush2.msra.mxu0 0.0
    %259 = vmatprep.subr.mxu0 0.0
    %260 = vmatpush2.msra.mxu0 0.0
    %261 = vmatprep.subr.mxu0 0.0
    %262 = vmatpush2.msra.mxu0 0.0
    %263 = vmatprep.mubr.f32.mxu0 0.0
    %264 = vmatmul.mubr.f32.gmra.mxu0 %v175
    %v265 = vpop.f32.mrf.mxu0
    %v266 = vadd.f32 %v197, %v265
    %v267 = vpop.f32.mrf.mxu0
    %268 = vdwg.mxu0
    %v269 = vmax.f32 %v266, 0.0
    %v270 = vld [vmem:[#allocation8] sm:$0xff]
    %v271 = vld [vmem:[#allocation8 + $0x8] sm:$0xff]
    %v272 = vld [vmem:[#allocation8 + $0x10] sm:$0xff]
    %v273 = vld [vmem:[#allocation8 + $0x18] sm:$0xff]
    %v274 = vld [vmem:[#allocation8 + $0x20] sm:$0xff]
    %v275 = vld [vmem:[#allocation8 + $0x28] sm:$0xff]
    %v276 = vld [vmem:[#allocation8 + $0x30] sm:$0xff]
    %v277 = vld [vmem:[#allocation8 + $0x38] sm:$0xff]
    %v278 = vld [vmem:[#allocation8 + $0x40] sm:$0xff]
    %v279 = vld [vmem:[#allocation8 + $0x48] sm:$0xff]
    %v280 = vld [vmem:[#allocation8 + $0x50] sm:$0xff]
    %v281 = vld [vmem:[#allocation8 + $0x58] sm:$0xff]
    %v282 = vld [vmem:[#allocation8 + $0x60] sm:$0xff]
    %v283 = vld [vmem:[#allocation8 + $0x68] sm:$0xff]
    %v284 = vld [vmem:[#allocation8 + $0x70] sm:$0xff]
    %v285 = vld [vmem:[#allocation8 + $0x78] sm:$0xff]
    %v286 = vld [vmem:[#allocation10] sm:$0x1]
    %v288 = vlaneseq
    %v289 = vshrl.u32 %v288, 7
    %v290 = vsub.s32 0, %v289
    %v291 = vrot.slane %v286, %v290
    %293 = vmatprep.subr.mxu0 0.0
    %294 = vmatpush1.msra.mxu0 %v285
    %295 = vmatprep.subr.mxu0 0.0
    %296 = vmatpush1.msra.mxu0 %v284
    %297 = vmatprep.subr.mxu0 0.0
    %298 = vmatpush1.msra.mxu0 %v283
    %299 = vmatprep.subr.mxu0 0.0
    %300 = vmatpush1.msra.mxu0 %v282
    %301 = vmatprep.subr.mxu0 0.0
    %302 = vmatpush1.msra.mxu0 %v281
    %303 = vmatprep.subr.mxu0 0.0
    %304 = vmatpush1.msra.mxu0 %v280
    %305 = vmatprep.subr.mxu0 0.0
    %306 = vmatpush1.msra.mxu0 %v279
    %307 = vmatprep.subr.mxu0 0.0
    %308 = vmatpush1.msra.mxu0 %v278
    %309 = vmatprep.subr.mxu0 0.0
    %310 = vmatpush1.msra.mxu0 %v277
    %311 = vmatprep.subr.mxu0 0.0
    %312 = vmatpush1.msra.mxu0 %v276
    %313 = vmatprep.subr.mxu0 0.0
    %314 = vmatpush1.msra.mxu0 %v275
    %315 = vmatprep.subr.mxu0 0.0
    %316 = vmatpush1.msra.mxu0 %v274
    %317 = vmatprep.subr.mxu0 0.0
    %318 = vmatpush1.msra.mxu0 %v273
    %319 = vmatprep.subr.mxu0 0.0
    %320 = vmatpush1.msra.mxu0 %v272
    %321 = vmatprep.subr.mxu0 0.0
    %322 = vmatpush1.msra.mxu0 %v271
    %323 = vmatprep.subr.mxu0 0.0
    %324 = vmatpush1.msra.mxu0 %v270
    %325 = vmatprep.subr.mxu0 0.0
    %326 = vmatpush2.msra.mxu0 0.0
    %327 = vmatprep.subr.mxu0 0.0
    %328 = vmatpush2.msra.mxu0 0.0
    %329 = vmatprep.subr.mxu0 0.0
    %330 = vmatpush2.msra.mxu0 0.0
    %331 = vmatprep.subr.mxu0 0.0
    %332 = vmatpush2.msra.mxu0 0.0
    %333 = vmatprep.subr.mxu0 0.0
    %334 = vmatpush2.msra.mxu0 0.0
    %335 = vmatprep.subr.mxu0 0.0
    %336 = vmatpush2.msra.mxu0 0.0
    %337 = vmatprep.subr.mxu0 0.0
    %338 = vmatpush2.msra.mxu0 0.0
    %339 = vmatprep.subr.mxu0 0.0
    %340 = vmatpush2.msra.mxu0 0.0
    %341 = vmatprep.subr.mxu0 0.0
    %342 = vmatpush2.msra.mxu0 0.0
    %343 = vmatprep.subr.mxu0 0.0
    %344 = vmatpush2.msra.mxu0 0.0
    %345 = vmatprep.subr.mxu0 0.0
    %346 = vmatpush2.msra.mxu0 0.0
    %347 = vmatprep.subr.mxu0 0.0
    %348 = vmatpush2.msra.mxu0 0.0
    %349 = vmatprep.subr.mxu0 0.0
    %350 = vmatpush2.msra.mxu0 0.0
    %351 = vmatprep.subr.mxu0 0.0
    %352 = vmatpush2.msra.mxu0 0.0
    %353 = vmatprep.subr.mxu0 0.0
    %354 = vmatpush2.msra.mxu0 0.0
    %355 = vmatprep.subr.mxu0 0.0
    %356 = vmatpush2.msra.mxu0 0.0
    %357 = vmatprep.mubr.f32.mxu0 0.0
    %358 = vmatmul.mubr.f32.gmra.mxu0 %v269
    %v359 = vpop.f32.mrf.mxu0
    %v360 = vadd.f32 %v291, %v359
    %v361 = vpop.f32.mrf.mxu0
    %362 = vdwg.mxu0
    %v363 = vtanh.pop %v360
    %364 = vst [vmem:[#allocation11] sm:$0x3] %v363
    // Predicated region
    $region50: #{actor_forward.1} parent=1 // pred_check
      _
    $region51: #{actor_forward.1} parent=1 // pred_check_branch
      %366 = sbr.rel (0) target = $region53
    $region52: #{actor_forward.1} parent=1 // pred_region
      %s368 = ssub.s32 32, 32
      %369 = vsyncadd [#allocation4], %s368
      %s371 = sshll.u32 [#allocation11], 4
      %s372 = int_to_ptr.vmem [resolvable:$true] %s371
      %374 = dma.vmem_to_hbm [thread:$0]  %s372, 32, %s7, [#allocation4]
    $region53: #{actor_forward.1} parent=1 // pred_fallthru
      _
    // Predicated region
    $region54: #{actor_forward.1} parent=1 // pred_check
      _
    $region55: #{actor_forward.1} parent=1 // pred_check_branch
      %376 = sbr.rel (0) target = $region57
    $region56: #{actor_forward.1} parent=1 // pred_region
      %377 = dma.done [#allocation4], 32
    $region57: #{actor_forward.1} parent=1 // pred_fallthru
      _
    %378 = vsyncpa [#allocation3], 1
    %379 = vsyncpa [#allocation6], 1
    %380 = vsyncpa [#allocation9], 1
    %381 = vsyncpa [#allocation4], 1

</llo_original>
